<compile_context>
chip_gen: v7x
topology: tpu7x:2x2x1
jax: 0.10.0
libtpu: 0.0.40
codegen_flags: <defaults>
</compile_context>

<pallas_src>
import functools

import jax
import jax.numpy as jnp
from jax import lax
from jax.experimental import pallas as pl
from jax.experimental.pallas import tpu as pltpu


def _round_up(x, m):
    return ((x + m - 1) // m) * m


def _layernorm(x, w, b, eps=1e-5):
    mu = jnp.mean(x, axis=-1, keepdims=True)
    var = jnp.mean((x - mu) ** 2, axis=-1, keepdims=True)
    return (x - mu) * lax.rsqrt(var + eps) * w + b


# ----------------- stage 1: patch embed + cls + pos + ln_pre -----------------

def embed_kernel(patches_ref, conv_w_ref, cls_ref, pos_ref,
                 ln_pre_w_ref, ln_pre_b_ref, x0_ref, *, n_patches):
    npad, d = x0_ref.shape
    # Conv2d(kernel=stride=patch, bias=False) == im2col matmul
    emb = jnp.dot(patches_ref[...], conv_w_ref[...],
                  preferred_element_type=jnp.float32)              # [Np, D] f32
    pos = pos_ref[...]                                             # [N, D] f32
    pieces = [cls_ref[...] + pos[0:1, :],                          # class token
              emb + pos[1:1 + n_patches, :]]                       # patch tokens
    n_tail = npad - 1 - n_patches
    if n_tail > 0:
        pieces.append(jnp.zeros((n_tail, d), jnp.float32))         # pad rows
    x = jnp.concatenate(pieces, axis=0)                            # [Npad, D]
    x0_ref[...] = _layernorm(x, ln_pre_w_ref[...], ln_pre_b_ref[...])


# ----------------- stage 2: transformer layers + ln_post(cls) ----------------

def encoder_kernel(x0_ref, qkv_w_ref, qkv_b_ref, out_w_ref, small_ref,
                   fc_w_ref, fc_b_ref, proj_w_ref,
                   ln_post_w_ref, ln_post_b_ref,
                   o_ref, x_scratch, attn_scratch,
                   *, num_heads, n_tokens, tb, npad):
    l = pl.program_id(1)
    n_layers = pl.num_programs(1)
    tbn, d = x_scratch.shape
    dh = d // num_heads

    # Initialize the residual stream from the precomputed embeddings once per
    # batch tile (first layer step).
    @pl.when(l == 0)
    def _init():
        for t in range(tb):
            x_scratch[t * npad:(t + 1) * npad, :] = x0_ref[t]

    x = x_scratch[...]                                             # [TB*Npad, D] f32

    # Packed small per-layer tensors: rows = ln1_w, ln1_b, ln2_w, ln2_b, out_b, proj_b
    ln1_w = small_ref[0:1, :]
    ln1_b = small_ref[1:2, :]
    ln2_w = small_ref[2:3, :]
    ln2_b = small_ref[3:4, :]
    out_b = small_ref[4:5, :]
    proj_b = small_ref[5:6, :]

    # ---- multi-head self attention ----
    xn = _layernorm(x, ln1_w, ln1_b).astype(jnp.bfloat16)
    # fused QKV projection over the whole batch tile (scale folded into q weights)
    qkv = (jnp.dot(xn, qkv_w_ref[...], preferred_element_type=jnp.float32)
           + qkv_b_ref[...]).astype(jnp.bfloat16)                  # [TBN, 3D]
    q = qkv[:, 0:d]
    k = qkv[:, d:2 * d]
    v = qkv[:, 2 * d:3 * d]

    key_valid = lax.broadcasted_iota(jnp.int32, (1, npad), 1) < n_tokens

    # per-image, per-head scores + softmax + PV; head outputs go into a
    # lane-aligned [TBN, D] buffer so the output projection is ONE matmul.
    for t in range(tb):
        rows = slice(t * npad, (t + 1) * npad)
        for h in range(num_heads):
            cols = slice(h * dh, (h + 1) * dh)
            s = jnp.einsum('nd,md->nm', q[rows, cols], k[rows, cols],
                           preferred_element_type=jnp.float32)     # [Npad, Npad]
            s = jnp.where(key_valid, s, -1e30)                     # mask pad keys
            s = s - jnp.max(s, axis=-1, keepdims=True)
            p = jnp.exp(s)
            p = p * pl.reciprocal(jnp.sum(p, axis=-1, keepdims=True), approx=True)
            oh = jnp.dot(p.astype(jnp.bfloat16), v[rows, cols],
                         preferred_element_type=jnp.float32)       # [Npad, dh]
            attn_scratch[rows, cols] = oh

    attn = jnp.dot(attn_scratch[...].astype(jnp.bfloat16), out_w_ref[...],
                   preferred_element_type=jnp.float32)             # [TBN, D]
    x = x + attn + out_b

    # ---- MLP: Linear -> QuickGELU -> Linear ----
    xn = _layernorm(x, ln2_w, ln2_b).astype(jnp.bfloat16)
    h1 = jnp.dot(xn, fc_w_ref[...],
                 preferred_element_type=jnp.float32) + fc_b_ref[...]
    h1 = h1 * jax.nn.sigmoid(1.702 * h1)                           # QuickGELU
    mlp = jnp.dot(h1.astype(jnp.bfloat16), proj_w_ref[...],
                  preferred_element_type=jnp.float32) + proj_b
    x = x + mlp

    x_scratch[...] = x

    # ---- last layer step: ln_post on the class tokens of the tile ----
    @pl.when(l == n_layers - 1)
    def _final():
        cls_rows = jnp.concatenate(
            [x[t * npad:t * npad + 1, :] for t in range(tb)], axis=0)  # [TB, D]
        o_ref[...] = _layernorm(cls_rows, ln_post_w_ref[...],
                                ln_post_b_ref[...]).astype(o_ref.dtype)


# ----------------------------- wrapper ---------------------------------------

def clip_image_encoder(x_nchw, params, *, patch_size, num_heads, batch_tile=4):
    B, C, H, W = x_nchw.shape
    P = patch_size
    Hp, Wp = H // P, W // P
    Np = Hp * Wp
    CPP = C * P * P
    D = params['conv_w'].shape[1]
    L = params['q_w'].shape[0]
    N = Np + 1
    dh = D // num_heads

    CPPp = _round_up(CPP, 128)            # lane-align patch feature dim
    Npad = _round_up(N, 8)                # sublane-align token dim

    TB = min(batch_tile, B)               # images per weight load
    while B % TB != 0:
        TB -= 1
    TBN = TB * Npad

    # ---- stage 1: im2col + patch embed + cls + pos + ln_pre ----
    patches = x_nchw.reshape(B, C, Hp, P, Wp, P)
    patches = patches.transpose(0, 2, 4, 1, 3, 5).reshape(B, Np, CPP)
    patches = jnp.pad(patches, ((0, 0), (0, 0), (0, CPPp - CPP))).astype(jnp.bfloat16)
    conv_w = jnp.pad(params['conv_w'],
                     ((0, CPPp - CPP), (0, 0))).astype(jnp.bfloat16)

    x0 = pl.pallas_call(
        functools.partial(embed_kernel, n_patches=Np),
        out_shape=jax.ShapeDtypeStruct((B, Npad, D), jnp.float32),
        grid=(B,),
        in_specs=[
            pl.BlockSpec((None, Np, CPPp), lambda b: (b, 0, 0)),
            pl.BlockSpec((CPPp, D), lambda b: (0, 0)),
            pl.BlockSpec((1, D), lambda b: (0, 0)),
            pl.BlockSpec((N, D), lambda b: (0, 0)),
            pl.BlockSpec((1, D), lambda b: (0, 0)),
            pl.BlockSpec((1, D), lambda b: (0, 0)),
        ],
        out_specs=pl.BlockSpec((None, Npad, D), lambda b: (b, 0, 0)),
        compiler_params=pltpu.CompilerParams(
            dimension_semantics=("parallel",)),
    )(patches, conv_w,
      params['cls'].astype(jnp.float32), params['pos'].astype(jnp.float32),
      params['ln_pre_w'].astype(jnp.float32), params['ln_pre_b'].astype(jnp.float32))

    # ---- stage 2: weight packing ----
    scale = 1.0 / float(dh) ** 0.5
    qkv_w = jnp.concatenate(
        [params['q_w'] * scale, params['k_w'], params['v_w']],
        axis=-1).astype(jnp.bfloat16)                              # [L, D, 3D]
    qkv_b = jnp.concatenate(
        [params['q_b'] * scale, params['k_b'], params['v_b']],
        axis=-1).astype(jnp.float32)                               # [L, 1, 3D]
    small = jnp.concatenate(
        [params['ln1_w'], params['ln1_b'], params['ln2_w'], params['ln2_b'],
         params['out_b'], params['proj_b'],
         jnp.zeros((L, 2, D), jnp.float32)], axis=1).astype(jnp.float32)  # [L, 8, D]
    out_w = params['out_w'].astype(jnp.bfloat16)
    fc_w = params['fc_w'].astype(jnp.bfloat16)
    fc_b = params['fc_b'].astype(jnp.float32)
    proj_w = params['proj_w'].astype(jnp.bfloat16)
    ln_post_w = params['ln_post_w'].astype(jnp.float32)
    ln_post_b = params['ln_post_b'].astype(jnp.float32)

    def lspec(*shape):                     # per-layer streamed weight
        zeros = (0,) * len(shape)
        return pl.BlockSpec((None,) + tuple(shape),
                            lambda bb, l, z=zeros: (l,) + z)

    kernel = functools.partial(encoder_kernel, num_heads=num_heads,
                               n_tokens=N, tb=TB, npad=Npad)

    out = pl.pallas_call(
        kernel,
        out_shape=jax.ShapeDtypeStruct((B // TB, TB, D), jnp.float32),
        grid=(B // TB, L),
        in_specs=[
            pl.BlockSpec((TB, Npad, D), lambda bb, l: (bb, 0, 0)),  # x0, resident across l
            lspec(D, 3 * D),     # qkv_w
            lspec(1, 3 * D),     # qkv_b
            lspec(D, D),         # out_w
            lspec(8, D),         # packed small per-layer tensors
            lspec(D, 4 * D),     # fc_w
            lspec(1, 4 * D),     # fc_b
            lspec(4 * D, D),     # proj_w
            pl.BlockSpec((1, D), lambda bb, l: (0, 0)),             # ln_post_w
            pl.BlockSpec((1, D), lambda bb, l: (0, 0)),             # ln_post_b
        ],
        out_specs=pl.BlockSpec((None, TB, D), lambda bb, l: (bb, 0, 0)),
        scratch_shapes=[pltpu.VMEM((TBN, D), jnp.float32),          # residual stream
                        pltpu.VMEM((TBN, D), jnp.float32)],         # head outputs
        compiler_params=pltpu.CompilerParams(
            dimension_semantics=("parallel", "arbitrary"),
            vmem_limit_bytes=48 * 1024 * 1024),
    )(x0, qkv_w, qkv_b, out_w, small, fc_w, fc_b, proj_w, ln_post_w, ln_post_b)

    return out.reshape(B, D)


# ----------------------------- reference (pure JAX, f32) ---------------------

def clip_image_encoder_ref(x_nchw, params, *, patch_size, num_heads):
    B, C, H, W = x_nchw.shape
    P = patch_size
    Hp, Wp = H // P, W // P
    D = params['conv_w'].shape[1]
    Dh = D // num_heads
    scale = 1.0 / float(Dh) ** 0.5
    L = params['q_w'].shape[0]

    def ln(x, w, b, eps=1e-5):
        mu = jnp.mean(x, -1, keepdims=True)
        var = jnp.mean((x - mu) ** 2, -1, keepdims=True)
        return (x - mu) / jnp.sqrt(var + eps) * w + b

    patches = x_nchw.reshape(B, C, Hp, P, Wp, P)
    patches = patches.transpose(0, 2, 4, 1, 3, 5).reshape(B, Hp * Wp, C * P * P)
    x = patches @ params['conv_w']
    cls = jnp.broadcast_to(params['cls'][None], (B, 1, D))
    x = jnp.concatenate([cls, x], axis=1) + params['pos'][None]
    x = ln(x, params['ln_pre_w'], params['ln_pre_b'])
    for l in range(L):
        xn = ln(x, params['ln1_w'][l], params['ln1_b'][l])
        q = xn @ params['q_w'][l] + params['q_b'][l]
        k = xn @ params['k_w'][l] + params['k_b'][l]
        v = xn @ params['v_w'][l] + params['v_b'][l]
        q = q.reshape(B, -1, num_heads, Dh).transpose(0, 2, 1, 3) * scale
        k = k.reshape(B, -1, num_heads, Dh).transpose(0, 2, 1, 3)
        v = v.reshape(B, -1, num_heads, Dh).transpose(0, 2, 1, 3)
        s = jnp.einsum('bhnd,bhmd->bhnm', q, k)
        p = jax.nn.softmax(s, axis=-1)
        a = jnp.einsum('bhnm,bhmd->bhnd', p, v)
        a = a.transpose(0, 2, 1, 3).reshape(B, -1, D)
        x = x + (a @ params['out_w'][l] + params['out_b'][l])
        xn = ln(x, params['ln2_w'][l], params['ln2_b'][l])
        h1 = xn @ params['fc_w'][l] + params['fc_b'][l]
        h1 = h1 * jax.nn.sigmoid(1.702 * h1)
        x = x + (h1 @ params['proj_w'][l] + params['proj_b'][l])
    return ln(x[:, 0, :], params['ln_post_w'], params['ln_post_b'])


# ----------------------------- main ------------------------------------------

if __name__ == "__main__":
    B, C, H, W = 2, 3, 16, 16          # image, NCHW
    P = 4                              # patch size
    D = 32                             # viz_embed_dim
    L = 2                              # transformer layers
    NH = 4                             # attention heads
    Np = (H // P) * (W // P)
    N = Np + 1
    CPP = C * P * P

    key = jax.random.PRNGKey(0)
    ks = iter(jax.random.split(key, 40))
    nrm = lambda shp, s=0.02: (s * jax.random.normal(next(ks), shp)).astype(jnp.float32)

    params = {
        'conv_w': nrm((CPP, D)),                   # Conv2d weight, pre-flattened/transposed
        'cls': nrm((1, D)),                        # class_embedding
        'pos': nrm((N, D)),                        # positional_embedding
        'ln_pre_w': jnp.ones((1, D), jnp.float32),
        'ln_pre_b': jnp.zeros((1, D), jnp.float32),
        'q_w': nrm((L, D, D)), 'q_b': nrm((L, 1, D)),      # in_proj split q/k/v, .T
        'k_w': nrm((L, D, D)), 'k_b': nrm((L, 1, D)),
        'v_w': nrm((L, D, D)), 'v_b': nrm((L, 1, D)),
        'out_w': nrm((L, D, D)), 'out_b': nrm((L, 1, D)),  # out_proj.weight.T
        'ln1_w': jnp.ones((L, 1, D), jnp.float32),
        'ln1_b': jnp.zeros((L, 1, D), jnp.float32),
        'ln2_w': jnp.ones((L, 1, D), jnp.float32),
        'ln2_b': jnp.zeros((L, 1, D), jnp.float32),
        'fc_w': nrm((L, D, 4 * D)), 'fc_b': nrm((L, 1, 4 * D)),   # mlp.c_fc.weight.T
        'proj_w': nrm((L, 4 * D, D)), 'proj_b': nrm((L, 1, D)),   # mlp.c_proj.weight.T
        'ln_post_w': jnp.ones((1, D), jnp.float32),
        'ln_post_b': jnp.zeros((1, D), jnp.float32),
    }

    x = jax.random.normal(next(ks), (B, C, H, W), dtype=jnp.float32)

    out = clip_image_encoder(x, params, patch_size=P, num_heads=NH)
    out = jax.block_until_ready(out)

    ref = clip_image_encoder_ref(x, params, patch_size=P, num_heads=NH)
    assert out.shape == (B, D)
    err = float(jnp.max(jnp.abs(out - ref)))
    assert jnp.allclose(out, ref, atol=3e-2, rtol=3e-2), \
        f"mismatch vs reference (max abs err {err})"

    print("KERNEL_OK")
</pallas_src>

<mosaic_0001>
module attributes {stable_mosaic.version = 11 : i64} {
  func.func @embed_kernel(%arg0: i32, %arg1: memref<1x16x128xbf16, #tpu.memory_space<vmem>>, %arg2: memref<128x32xbf16, #tpu.memory_space<vmem>>, %arg3: memref<1x32xf32, #tpu.memory_space<vmem>>, %arg4: memref<17x32xf32, #tpu.memory_space<vmem>>, %arg5: memref<1x32xf32, #tpu.memory_space<vmem>>, %arg6: memref<1x32xf32, #tpu.memory_space<vmem>>, %arg7: memref<1x24x32xf32, #tpu.memory_space<vmem>>) attributes {dimension_semantics = [#tpu.dimension_semantics<parallel>], iteration_bounds = array<i64: 2>, scalar_prefetch = 0 : i64, scratch_operands = 0 : i64, tpu.core_type = #tpu.core_type<tc>, window_params = [{transform_indices = @transform_0, window_bounds = array<i64: 1, 16, 128>}, {pipeline_mode = #tpu.pipeline_mode<synchronous>, transform_indices = @transform_1, window_bounds = array<i64: 128, 32>}, {pipeline_mode = #tpu.pipeline_mode<synchronous>, transform_indices = @transform_2, window_bounds = array<i64: 1, 32>}, {pipeline_mode = #tpu.pipeline_mode<synchronous>, transform_indices = @transform_3, window_bounds = array<i64: 17, 32>}, {pipeline_mode = #tpu.pipeline_mode<synchronous>, transform_indices = @transform_4, window_bounds = array<i64: 1, 32>}, {pipeline_mode = #tpu.pipeline_mode<synchronous>, transform_indices = @transform_5, window_bounds = array<i64: 1, 32>}, {transform_indices = @transform_6, window_bounds = array<i64: 1, 24, 32>}]} {
    %c0 = arith.constant 0 : index
    %c0_0 = arith.constant 0 : index
    %c0_1 = arith.constant 0 : index
    %0 = vector.load %arg1[%c0, %c0_0, %c0_1] : memref<1x16x128xbf16, #tpu.memory_space<vmem>>, vector<1x16x128xbf16>
    %1 = vector.shape_cast %0 : vector<1x16x128xbf16> to vector<16x128xbf16>
    %c0_2 = arith.constant 0 : index
    %c0_3 = arith.constant 0 : index
    %2 = vector.load %arg2[%c0_2, %c0_3] : memref<128x32xbf16, #tpu.memory_space<vmem>>, vector<128x32xbf16>
    %cst = arith.constant dense<0.000000e+00> : vector<16x32xf32>
    %3 = tpu.matmul %1, %2, %cst {dimension_numbers = #tpu.dot_dimension_numbers<[1], [0], [0], [1], [0, 0, 1, 1], [], []>} : vector<16x128xbf16>, vector<128x32xbf16>, vector<16x32xf32> -> vector<16x32xf32>
    %c0_4 = arith.constant 0 : index
    %c0_5 = arith.constant 0 : index
    %4 = vector.load %arg4[%c0_4, %c0_5] : memref<17x32xf32, #tpu.memory_space<vmem>>, vector<17x32xf32>
    %c0_6 = arith.constant 0 : index
    %c0_7 = arith.constant 0 : index
    %5 = vector.load %arg3[%c0_6, %c0_7] : memref<1x32xf32, #tpu.memory_space<vmem>>, vector<1x32xf32>
    %6 = vector.extract_strided_slice %4 {offsets = [0, 0], sizes = [1, 32], strides = [1, 1]} : vector<17x32xf32> to vector<1x32xf32>
    %7 = arith.addf %5, %6 : vector<1x32xf32>
    %8 = vector.extract_strided_slice %4 {offsets = [1, 0], sizes = [16, 32], strides = [1, 1]} : vector<17x32xf32> to vector<16x32xf32>
    %9 = arith.addf %3, %8 : vector<16x32xf32>
    %cst_8 = arith.constant 0.000000e+00 : f32
    %10 = vector.broadcast %cst_8 : f32 to vector<7x32xf32>
    %11 = tpu.concatenate %7, %9, %10 in 0 : vector<1x32xf32>, vector<16x32xf32>, vector<7x32xf32> -> vector<24x32xf32>
    %c0_9 = arith.constant 0 : index
    %c0_10 = arith.constant 0 : index
    %12 = vector.load %arg5[%c0_9, %c0_10] : memref<1x32xf32, #tpu.memory_space<vmem>>, vector<1x32xf32>
    %c0_11 = arith.constant 0 : index
    %c0_12 = arith.constant 0 : index
    %13 = vector.load %arg6[%c0_11, %c0_12] : memref<1x32xf32, #tpu.memory_space<vmem>>, vector<1x32xf32>
    %cst_13 = arith.constant dense<0.000000e+00> : vector<24xf32>
    %14 = vector.multi_reduction <add>, %11, %cst_13 [1] : vector<24x32xf32> to vector<24xf32>
    %15 = vector.shape_cast %14 : vector<24xf32> to vector<24x1xf32>
    %cst_14 = arith.constant 3.200000e+01 : f32
    %16 = vector.broadcast %cst_14 : f32 to vector<24x1xf32>
    %17 = arith.divf %15, %16 : vector<24x1xf32>
    %18 = vector.broadcast %17 : vector<24x1xf32> to vector<24x32xf32>
    %19 = arith.subf %11, %18 : vector<24x32xf32>
    %20 = arith.mulf %19, %19 : vector<24x32xf32>
    %cst_15 = arith.constant dense<0.000000e+00> : vector<24xf32>
    %21 = vector.multi_reduction <add>, %20, %cst_15 [1] : vector<24x32xf32> to vector<24xf32>
    %22 = vector.shape_cast %21 : vector<24xf32> to vector<24x1xf32>
    %cst_16 = arith.constant 3.200000e+01 : f32
    %23 = vector.broadcast %cst_16 : f32 to vector<24x1xf32>
    %24 = arith.divf %22, %23 : vector<24x1xf32>
    %25 = vector.broadcast %17 : vector<24x1xf32> to vector<24x32xf32>
    %26 = arith.subf %11, %25 : vector<24x32xf32>
    %cst_17 = arith.constant 9.99999974E-6 : f32
    %27 = vector.broadcast %cst_17 : f32 to vector<24x1xf32>
    %28 = arith.addf %24, %27 : vector<24x1xf32>
    %29 = math.rsqrt %28 : vector<24x1xf32>
    %30 = vector.broadcast %29 : vector<24x1xf32> to vector<24x32xf32>
    %31 = arith.mulf %26, %30 : vector<24x32xf32>
    %32 = vector.broadcast %12 : vector<1x32xf32> to vector<24x32xf32>
    %33 = arith.mulf %31, %32 : vector<24x32xf32>
    %34 = vector.broadcast %13 : vector<1x32xf32> to vector<24x32xf32>
    %35 = arith.addf %33, %34 : vector<24x32xf32>
    %c0_18 = arith.constant 0 : index
    %c0_19 = arith.constant 0 : index
    %c0_20 = arith.constant 0 : index
    %36 = vector.load %arg7[%c0_18, %c0_19, %c0_20] : memref<1x24x32xf32, #tpu.memory_space<vmem>>, vector<1x24x32xf32>
    %37 = vector.shape_cast %36 : vector<1x24x32xf32> to vector<24x32xf32>
    %38 = vector.shape_cast %35 : vector<24x32xf32> to vector<1x24x32xf32>
    tpu.vector_store %arg7[%c0_18, %c0_19, %c0_20], %38 {strides = array<i32>} : memref<1x24x32xf32, #tpu.memory_space<vmem>>, vector<1x24x32xf32>,
    return
  }
  func.func @transform_0(%arg0: i32) -> (i32, i32, i32) {
    %c0_i32 = arith.constant 0 : i32
    %c0_i32_0 = arith.constant 0 : i32
    %c0_i32_1 = arith.constant 0 : i32
    return %arg0, %c0_i32, %c0_i32_0 : i32, i32, i32
  }
  func.func @transform_1(%arg0: i32) -> (i32, i32) {
    %c0_i32 = arith.constant 0 : i32
    %c0_i32_0 = arith.constant 0 : i32
    %c0_i32_1 = arith.constant 0 : i32
    return %c0_i32, %c0_i32_0 : i32, i32
  }
  func.func @transform_2(%arg0: i32) -> (i32, i32) {
    %c0_i32 = arith.constant 0 : i32
    %c0_i32_0 = arith.constant 0 : i32
    %c0_i32_1 = arith.constant 0 : i32
    return %c0_i32, %c0_i32_0 : i32, i32
  }
  func.func @transform_3(%arg0: i32) -> (i32, i32) {
    %c0_i32 = arith.constant 0 : i32
    %c0_i32_0 = arith.constant 0 : i32
    %c0_i32_1 = arith.constant 0 : i32
    return %c0_i32, %c0_i32_0 : i32, i32
  }
  func.func @transform_4(%arg0: i32) -> (i32, i32) {
    %c0_i32 = arith.constant 0 : i32
    %c0_i32_0 = arith.constant 0 : i32
    %c0_i32_1 = arith.constant 0 : i32
    return %c0_i32, %c0_i32_0 : i32, i32
  }
  func.func @transform_5(%arg0: i32) -> (i32, i32) {
    %c0_i32 = arith.constant 0 : i32
    %c0_i32_0 = arith.constant 0 : i32
    %c0_i32_1 = arith.constant 0 : i32
    return %c0_i32, %c0_i32_0 : i32, i32
  }
  func.func @transform_6(%arg0: i32) -> (i32, i32, i32) {
    %c0_i32 = arith.constant 0 : i32
    %c0_i32_0 = arith.constant 0 : i32
    %c0_i32_1 = arith.constant 0 : i32
    return %arg0, %c0_i32, %c0_i32_0 : i32, i32, i32
  }
}

</mosaic_0001>

<llo_original>
// kernel: tpu_custom_call.1
$region0: #{tpu_custom_call.1}
  #allocation0 [shape = 'u32[]', space=smem, size = 0x4, offset = 0x4, fixed_abs, tag = 'smem constant byte address 0x4 - core index']
  #allocation1 [shape = 'u32[144,128]{1,0:T(1,128)}', space=vmem, size = 0x12000, scoped, tag = 'internal scratch']
  %s0 = inlined_call_operand.vmem [shape: bf16[2,16,128], index: 0, kind: input, shape index: {}]
  %s1 = inlined_call_operand.vmem [shape: bf16[128,32], index: 1, kind: input, shape index: {}]
  %s2 = inlined_call_operand.vmem [shape: f32[1,32], index: 2, kind: input, shape index: {}]
  %s3 = inlined_call_operand.vmem [shape: f32[17,32], index: 3, kind: input, shape index: {}]
  %s4 = inlined_call_operand.vmem [shape: f32[1,32], index: 4, kind: input, shape index: {}]
  %s5 = inlined_call_operand.vmem [shape: f32[1,32], index: 5, kind: input, shape index: {}]
  %s6 = inlined_call_operand.hbm [shape: f32[2,24,32], index: 6, kind: output, shape index: {}]
  %s7 = sld [smem:[#allocation0]]
  $region57: #{tpu_custom_call.1} parent=0
    _
  %s9 = ssub.s32 1, %s7
  %s10 = scalar_select 0, %s9, %s7
  $region1: #{tpu_custom_call.1} parent=0
    #allocation2 [shape = 'u8[24576]{0}', space=vmem, size = 0x6000, scoped, tag = 'output window, operand 0']
    #allocation3 [shape = 's32[2]{0}', space=sflag, size = 0x8, scoped, tag = 'scoped memory for tpu_custom_call.1']
    %11 = vsyncpa [#allocation3], 0
    %s12 = scalar_lea.sflag [#allocation3], 1
    %13 = vsyncpa %s12, 0
    loop: start=0, step=1, limit=4
    $region2: #{tpu_custom_call.1} parent=1 // loop_pre_header
      _
    $region3: #{tpu_custom_call.1} parent=1 // loop_header
      %s15 = sphi 0, %s19
      %p16 = scmp.ge.s32.totalorder %s15, 4
      %s25 = sphi 0, %s27
      %s28 = sphi 0, %s25
      %s29 = sphi 0, %s28
      %s45 = sphi 0, %s29
      %s49 = sphi 0, %s49
      %s51 = sphi 0, %s49
      %s52 = sphi 0, %s51
      %s66 = sphi 0, %s52
      %s70 = sphi 0, %s70
      %s72 = sphi 0, %s70
      %s73 = sphi 0, %s72
      %s87 = sphi 0, %s73
      %s91 = sphi 0, %s91
      %s93 = sphi 0, %s91
      %s94 = sphi 0, %s93
      %s108 = sphi 0, %s94
      %s112 = sphi 0, %s112
      %s114 = sphi 0, %s112
      %s115 = sphi 0, %s114
      %s129 = sphi 0, %s115
      %s133 = sphi 0, %s133
      %s135 = sphi 0, %s133
      %s136 = sphi 0, %s135
      %s150 = sphi 0, %s136
      %s156 = sphi 0, %s158
      %s159 = sphi 0, %s156
      %s160 = sphi 0, %s159
      %s176 = sphi 0, %s160
    $region4: #{tpu_custom_call.1} parent=1 // loop_header_branch
      %18 = sbr.rel (%p16) target = $region8
    $region5: #{tpu_custom_call.1} parent=1 // loop_body
      %s20 = ssub.s32 %s15, 1
      %s21 = ssub.s32 %s15, 2
      %s22 = sadd.s32 %s15, 1
      %s23 = ssub.s32 %s15, %s22
      %p24 = scmp.eq.s32.totalorder %s23, 0
      %s26 = sadd.s32 %s25, 1
      %s27 = scalar_select %p24, %s25, %s26
      %p30 = pneg %p24
      %p31 = scmp.eq.s32.totalorder %s15, 1
      %p32 = por %p30, %p31
      %p33 = scmp.ne.s32.totalorder %s25, %s28
      %p34 = scmp.eq.s32.totalorder %s15, 0
      %p35 = por %p33, %p34
      %p36 = scmp.ne.s32.totalorder %s25, %s28
      %p37 = scmp.eq.s32.totalorder %s20, 1
      %p38 = por %p36, %p37
      %p39 = scmp.ne.s32.totalorder %s28, %s29
      %p40 = scmp.eq.s32.totalorder %s20, 0
      %p41 = por %p39, %p40
      %p42 = scmp.ne.s32.totalorder %s28, %s29
      %p43 = scmp.eq.s32.totalorder %s21, 1
      %p44 = por %p42, %p43
      %p46 = scmp.ne.s32.totalorder %s29, %s45
      %p47 = scmp.eq.s32.totalorder %s21, 0
      %p48 = por %p46, %p47
      %s50 = sadd.s32 %s49, 1
      %p53 = scmp.eq.s32.totalorder %s15, 1
      %p54 = scmp.ne.s32.totalorder %s49, %s51
      %p55 = scmp.eq.s32.totalorder %s15, 0
      %p56 = por %p54, %p55
      %p57 = scmp.ne.s32.totalorder %s49, %s51
      %p58 = scmp.eq.s32.totalorder %s20, 1
      %p59 = por %p57, %p58
      %p60 = scmp.ne.s32.totalorder %s51, %s52
      %p61 = scmp.eq.s32.totalorder %s20, 0
      %p62 = por %p60, %p61
      %p63 = scmp.ne.s32.totalorder %s51, %s52
      %p64 = scmp.eq.s32.totalorder %s21, 1
      %p65 = por %p63, %p64
      %p67 = scmp.ne.s32.totalorder %s52, %s66
      %p68 = scmp.eq.s32.totalorder %s21, 0
      %p69 = por %p67, %p68
      %s71 = sadd.s32 %s70, 1
      %p74 = scmp.eq.s32.totalorder %s15, 1
      %p75 = scmp.ne.s32.totalorder %s70, %s72
      %p76 = scmp.eq.s32.totalorder %s15, 0
      %p77 = por %p75, %p76
      %p78 = scmp.ne.s32.totalorder %s70, %s72
      %p79 = scmp.eq.s32.totalorder %s20, 1
      %p80 = por %p78, %p79
      %p81 = scmp.ne.s32.totalorder %s72, %s73
      %p82 = scmp.eq.s32.totalorder %s20, 0
      %p83 = por %p81, %p82
      %p84 = scmp.ne.s32.totalorder %s72, %s73
      %p85 = scmp.eq.s32.totalorder %s21, 1
      %p86 = por %p84, %p85
      %p88 = scmp.ne.s32.totalorder %s73, %s87
      %p89 = scmp.eq.s32.totalorder %s21, 0
      %p90 = por %p88, %p89
      %s92 = sadd.s32 %s91, 1
      %p95 = scmp.eq.s32.totalorder %s15, 1
      %p96 = scmp.ne.s32.totalorder %s91, %s93
      %p97 = scmp.eq.s32.totalorder %s15, 0
      %p98 = por %p96, %p97
      %p99 = scmp.ne.s32.totalorder %s91, %s93
      %p100 = scmp.eq.s32.totalorder %s20, 1
      %p101 = por %p99, %p100
      %p102 = scmp.ne.s32.totalorder %s93, %s94
      %p103 = scmp.eq.s32.totalorder %s20, 0
      %p104 = por %p102, %p103
      %p105 = scmp.ne.s32.totalorder %s93, %s94
      %p106 = scmp.eq.s32.totalorder %s21, 1
      %p107 = por %p105, %p106
      %p109 = scmp.ne.s32.totalorder %s94, %s108
      %p110 = scmp.eq.s32.totalorder %s21, 0
      %p111 = por %p109, %p110
      %s113 = sadd.s32 %s112, 1
      %p116 = scmp.eq.s32.totalorder %s15, 1
      %p117 = scmp.ne.s32.totalorder %s112, %s114
      %p118 = scmp.eq.s32.totalorder %s15, 0
      %p119 = por %p117, %p118
      %p120 = scmp.ne.s32.totalorder %s112, %s114
      %p121 = scmp.eq.s32.totalorder %s20, 1
      %p122 = por %p120, %p121
      %p123 = scmp.ne.s32.totalorder %s114, %s115
      %p124 = scmp.eq.s32.totalorder %s20, 0
      %p125 = por %p123, %p124
      %p126 = scmp.ne.s32.totalorder %s114, %s115
      %p127 = scmp.eq.s32.totalorder %s21, 1
      %p128 = por %p126, %p127
      %p130 = scmp.ne.s32.totalorder %s115, %s129
      %p131 = scmp.eq.s32.totalorder %s21, 0
      %p132 = por %p130, %p131
      %s134 = sadd.s32 %s133, 1
      %p137 = scmp.eq.s32.totalorder %s15, 1
      %p138 = scmp.ne.s32.totalorder %s133, %s135
      %p139 = scmp.eq.s32.totalorder %s15, 0
      %p140 = por %p138, %p139
      %p141 = scmp.ne.s32.totalorder %s133, %s135
      %p142 = scmp.eq.s32.totalorder %s20, 1
      %p143 = por %p141, %p142
      %p144 = scmp.ne.s32.totalorder %s135, %s136
      %p145 = scmp.eq.s32.totalorder %s20, 0
      %p146 = por %p144, %p145
      %p147 = scmp.ne.s32.totalorder %s135, %s136
      %p148 = scmp.eq.s32.totalorder %s21, 1
      %p149 = por %p147, %p148
      %p151 = scmp.ne.s32.totalorder %s136, %s150
      %p152 = scmp.eq.s32.totalorder %s21, 0
      %p153 = por %p151, %p152
      %s154 = ssub.s32 %s15, %s22
      %p155 = scmp.eq.s32.totalorder %s154, 0
      %s157 = sadd.s32 %s156, 1
      %s158 = scalar_select %p155, %s156, %s157
      %p161 = pneg %p155
      %p162 = scmp.eq.s32.totalorder %s15, 1
      %p163 = por %p161, %p162
      %p164 = scmp.ne.s32.totalorder %s156, %s159
      %p165 = scmp.eq.s32.totalorder %s15, 0
      %p166 = por %p164, %p165
      %p167 = scmp.ne.s32.totalorder %s156, %s159
      %p168 = scmp.eq.s32.totalorder %s20, 1
      %p169 = por %p167, %p168
      %p170 = scmp.ne.s32.totalorder %s159, %s160
      %p171 = scmp.eq.s32.totalorder %s20, 0
      %p172 = por %p170, %p171
      %p173 = scmp.ne.s32.totalorder %s159, %s160
      %p174 = scmp.eq.s32.totalorder %s21, 1
      %p175 = por %p173, %p174
      %p177 = scmp.ne.s32.totalorder %s160, %s176
      %p178 = scmp.eq.s32.totalorder %s21, 0
      %p179 = por %p177, %p178
      %p180 = scmp.le.s32.totalorder 1, %s15
      %p181 = scmp.lt.s32.totalorder %s15, 3
      %p182 = pnand %p180, %p181
      %p183 = pneg %p182
      // Predicated region
      $region9: #{tpu_custom_call.1} parent=5 // pred_check
        _
      $region10: #{tpu_custom_call.1} parent=5 // pred_check_branch
        %185 = sbr.rel (%p182) target = $region12
      $region11: #{tpu_custom_call.1} parent=5 // pred_region
        %s186 = ssub.s32 %s15, 1
        // Predicated region
        $region13: #{tpu_custom_call.1} parent=11 // pred_check
          %p187 = pneg %p62
        $region14: #{tpu_custom_call.1} parent=11 // pred_check_branch
          %189 = sbr.rel (%p187) target = $region16
        $region15: #{tpu_custom_call.1} parent=11 // pred_region
          _
        $region16: #{tpu_custom_call.1} parent=11 // pred_fallthru
          _
        // Predicated region
        $region17: #{tpu_custom_call.1} parent=11 // pred_check
          %p190 = pneg %p83
        $region18: #{tpu_custom_call.1} parent=11 // pred_check_branch
          %192 = sbr.rel (%p190) target = $region20
        $region19: #{tpu_custom_call.1} parent=11 // pred_region
          _
        $region20: #{tpu_custom_call.1} parent=11 // pred_fallthru
          _
        // Predicated region
        $region21: #{tpu_custom_call.1} parent=11 // pred_check
          %p193 = pneg %p104
        $region22: #{tpu_custom_call.1} parent=11 // pred_check_branch
          %195 = sbr.rel (%p193) target = $region24
        $region23: #{tpu_custom_call.1} parent=11 // pred_region
          _
        $region24: #{tpu_custom_call.1} parent=11 // pred_fallthru
          _
        // Predicated region
        $region25: #{tpu_custom_call.1} parent=11 // pred_check
          %p196 = pneg %p125
        $region26: #{tpu_custom_call.1} parent=11 // pred_check_branch
          %198 = sbr.rel (%p196) target = $region28
        $region27: #{tpu_custom_call.1} parent=11 // pred_region
          _
        $region28: #{tpu_custom_call.1} parent=11 // pred_fallthru
          _
        // Predicated region
        $region29: #{tpu_custom_call.1} parent=11 // pred_check
          %p199 = pneg %p146
        $region30: #{tpu_custom_call.1} parent=11 // pred_check_branch
          %201 = sbr.rel (%p199) target = $region32
        $region31: #{tpu_custom_call.1} parent=11 // pred_region
          _
        $region32: #{tpu_custom_call.1} parent=11 // pred_fallthru
          _
      $region12: #{tpu_custom_call.1} parent=5 // pred_fallthru
        _
      %p202 = scmp.lt.s32.totalorder %s15, 2
      // Predicated region
      $region33: #{tpu_custom_call.1} parent=5 // pred_check
        %p203 = pneg %p202
      $region34: #{tpu_custom_call.1} parent=5 // pred_check_branch
        %205 = sbr.rel (%p203) target = $region36
      $region35: #{tpu_custom_call.1} parent=5 // pred_region
        // Predicated region
        $region37: #{tpu_custom_call.1} parent=35 // pred_check
          %p206 = pneg %p35
        $region38: #{tpu_custom_call.1} parent=35 // pred_check_branch
          %208 = sbr.rel (%p206) target = $region40
        $region39: #{tpu_custom_call.1} parent=35 // pred_region
          %p209 = scmp.lt.s32.totalorder %s15, 1
          %s210 = scalar_select %p209, %s15, 1
          %s211 = smul.addr %s210, 2
          %s212 = smul.addr %s211, 4
          %s213 = scalar_lea.vmem %s0, %s212
        $region40: #{tpu_custom_call.1} parent=35 // pred_fallthru
          _
      $region36: #{tpu_custom_call.1} parent=5 // pred_fallthru
        _
      %p214 = scmp.le.s32.totalorder 1, %s15
      %p215 = scmp.lt.s32.totalorder %s15, 3
      %p216 = pnand %p214, %p215
      %p217 = pneg %p216
      // Predicated region
      $region41: #{tpu_custom_call.1} parent=5 // pred_check
        _
      $region42: #{tpu_custom_call.1} parent=5 // pred_check_branch
        %219 = sbr.rel (%p216) target = $region44
      $region43: #{tpu_custom_call.1} parent=5 // pred_region
        %s220 = ssub.s32 %s15, 1
        %p221 = scmp.lt.s32.totalorder %s20, 1
        %s222 = scalar_select %p221, %s20, 1
        %s223 = smul.addr %s222, 2
        %s224 = smul.addr %s223, 4
        %s225 = scalar_lea.vmem %s0, %s224
        %p226 = pneg %p41
        %p227 = pneg %p38
        %p228 = pneg %p62
        %p229 = pneg %p59
        %p230 = pneg %p83
        %p231 = pneg %p80
        %p232 = pneg %p104
        %p233 = pneg %p101
        %p234 = pneg %p125
        %p235 = pneg %p122
        %p236 = pneg %p146
        %p237 = pneg %p143
        %p238 = pneg %p172
        %p239 = pneg %p169
        %s240 = sand.u32 %s159, 1
        %s241 = scalar_lea.sflag [#allocation3], %s240
        %s242 = sand.u32 %s159, 1
        %s243 = smul.addr %s242, 24
        %s244 = scalar_lea.vmem [#allocation2], %s243
        %p245 = scmp.lt.s32.totalorder %s20, 1
        %s246 = scalar_select %p245, %s20, 1
        %s247 = smul.addr %s246, 2
        %s248 = smul.addr %s247, 4
        %s249 = scalar_lea.vmem %s0, %s248
        %v251 = vld [vmem:[%s249] sm:$0xf]
        %v252 = vld [vmem:[%s249 + $0x4] sm:$0xf]
        %v253 = vld [vmem:[%s1] sm:$0xf]
        %v254 = vld [vmem:[%s1 + $0x4] sm:$0xf]
        %v255 = vld [vmem:[%s1 + $0x8] sm:$0xf]
        %v256 = vld [vmem:[%s1 + $0xc] sm:$0xf]
        %v257 = vld [vmem:[%s1 + $0x10] sm:$0xf]
        %v258 = vld [vmem:[%s1 + $0x14] sm:$0xf]
        %v259 = vld [vmem:[%s1 + $0x18] sm:$0xf]
        %v260 = vld [vmem:[%s1 + $0x1c] sm:$0xf]
        %v261 = vld [vmem:[%s1 + $0x20] sm:$0xf]
        %v262 = vld [vmem:[%s1 + $0x24] sm:$0xf]
        %v263 = vld [vmem:[%s1 + $0x28] sm:$0xf]
        %v264 = vld [vmem:[%s1 + $0x2c] sm:$0xf]
        %v265 = vld [vmem:[%s1 + $0x30] sm:$0xf]
        %v266 = vld [vmem:[%s1 + $0x34] sm:$0xf]
        %v267 = vld [vmem:[%s1 + $0x38] sm:$0xf]
        %v268 = vld [vmem:[%s1 + $0x3c] sm:$0xf]
        %v269 = vld [vmem:[%s3] sm:$0xff]
        %v270 = vld [vmem:[%s3 + $0x8] sm:$0xff]
        %v271 = vld [vmem:[%s3 + $0x10] sm:$0x1]
        %v272 = vld [vmem:[%s2] sm:$0x1]
        %v273 = vadd.f32 %v272, %v269
        %v276 = vunpack.c.l.b16 %v251
        %v277 = vunpack.c.l.b16 %v252
        %v278 = vpack.c.b16 %v277, %v276
        %v296 = vunpack.c.l.b16 %v253
        %v297 = vunpack.c.l.b16 %v254
        %v298 = vunpack.c.l.b16 %v255
        %v299 = vunpack.c.l.b16 %v256
        %v300 = vunpack.c.l.b16 %v257
        %v301 = vunpack.c.l.b16 %v258
        %v302 = vunpack.c.l.b16 %v259
        %v303 = vunpack.c.l.b16 %v260
        %v304 = vunpack.c.l.b16 %v261
        %v305 = vunpack.c.l.b16 %v262
        %v306 = vunpack.c.l.b16 %v263
        %v307 = vunpack.c.l.b16 %v264
        %v308 = vunpack.c.l.b16 %v265
        %v309 = vunpack.c.l.b16 %v266
        %v310 = vunpack.c.l.b16 %v267
        %v311 = vunpack.c.l.b16 %v268
        %v312 = vpack.c.b16 %v297, %v296
        %v313 = vpack.c.b16 %v299, %v298
        %v314 = vpack.c.b16 %v301, %v300
        %v315 = vpack.c.b16 %v303, %v302
        %v316 = vpack.c.b16 %v305, %v304
        %v317 = vpack.c.b16 %v307, %v306
        %v318 = vpack.c.b16 %v309, %v308
        %v319 = vpack.c.b16 %v311, %v310
        %vm331 = vcmask 1046528
        %v332 = vrot.slane %v269, 1
        %v333 = vrot.slane %v270, 1
        %v334 = vsel %vm331, %v332, %v333
        %v335 = vrot.slane %v271, 1
        %v336 = vsel %vm331, %v333, %v335
        %339 = vmatprep.subr.bf16.mxu0 0
        %340 = vmatpush1.bf16.msra.mxu0 %v312
        %341 = vmatprep.subr.bf16.mxu0 0
        %342 = vmatpush1.bf16.msra.mxu0 %v313
        %343 = vmatprep.subr.bf16.mxu0 0
        %344 = vmatpush1.bf16.msra.mxu0 %v314
        %345 = vmatprep.subr.bf16.mxu0 0
        %346 = vmatpush1.bf16.msra.mxu0 %v315
        %347 = vmatprep.subr.bf16.mxu0 0
        %348 = vmatpush1.bf16.msra.mxu0 %v316
        %349 = vmatprep.subr.bf16.mxu0 0
        %350 = vmatpush1.bf16.msra.mxu0 %v317
        %351 = vmatprep.subr.bf16.mxu0 0
        %352 = vmatpush1.bf16.msra.mxu0 %v318
        %353 = vmatprep.subr.bf16.mxu0 0
        %354 = vmatpush1.bf16.msra.mxu0 %v319
        %355 = vmatprep.subr.bf16.mxu0 0
        %356 = vmatpush1.bf16.msra.mxu0 0
        %357 = vmatprep.subr.bf16.mxu0 0
        %358 = vmatpush1.bf16.msra.mxu0 0
        %359 = vmatprep.subr.bf16.mxu0 0
        %360 = vmatpush1.bf16.msra.mxu0 0
        %361 = vmatprep.subr.bf16.mxu0 0
        %362 = vmatpush1.bf16.msra.mxu0 0
        %363 = vmatprep.subr.bf16.mxu0 0
        %364 = vmatpush1.bf16.msra.mxu0 0
        %365 = vmatprep.subr.bf16.mxu0 0
        %366 = vmatpush1.bf16.msra.mxu0 0
        %367 = vmatprep.subr.bf16.mxu0 0
        %368 = vmatpush1.bf16.msra.mxu0 0
        %369 = vmatprep.subr.bf16.mxu0 0
        %370 = vmatpush1.bf16.msra.mxu0 0
        %371 = vmatprep.mubr.bf16.mxu0 0
        %372 = vmatmul.mubr.bf16.gmra.mrb[0].mxu0 %v278
        %v373 = vpop.f32.mrb[0].mxu0
        %v374 = vadd.f32 %v334, %v373
        %v375 = vpop.f32.mrb[0].mxu0
        %v376 = vpop.f32.mrb[0].mxu0
        %v377 = vadd.f32 %v336, %v376
        %v378 = vpop.f32.mrb[0].mxu0
        %379 = vdwg.mxu0
        %vm382 = vcmask 1040384
        %v383 = vrot.slane %v374, 7
        %v384 = vrot.slane %v377, 7
        %v385 = vsel %vm382, %v383, %v384
        %v389 = vsel %vm382, %v273, %v383
        %v390 = vsel %vm382, %v384, 0.0
        %v391 = vld [vmem:[%s4] sm:$0x1]
        %v392 = vld [vmem:[%s5] sm:$0x1]
        %vm393 = vcmask 261120
        %v394 = vsel %vm393, %v389, 0.0
        %395 = vadd.xlane.f32.xlu0 %v394
        %v396 = vpop.xlane.xlu0 %395
        %v397 = vsel %vm393, %v385, 0.0
        %398 = vadd.xlane.f32.xlu0 %v397
        %v399 = vpop.xlane.xlu0 %398
        %v400 = vsel %vm393, %v390, 0.0
        %401 = vadd.xlane.f32.xlu0 %v400
        %v402 = vpop.xlane.xlu0 %401
        %v403 = vrcp.pop 32.0
        %v404 = vmul.f32 %v396, %v403
        %v405 = vmul.f32 %v399, %v403
        %v406 = vmul.f32 %v402, %v403
        %v407 = vsub.f32 %v389, %v404
        %v408 = vsub.f32 %v385, %v405
        %v409 = vsub.f32 %v390, %v406
        %v410 = vmul.f32 %v407, %v407
        %v411 = vmul.f32 %v408, %v408
        %v412 = vmul.f32 %v409, %v409
        %v413 = vsel %vm393, %v410, 0.0
        %414 = vadd.xlane.f32.xlu0 %v413
        %v415 = vpop.xlane.xlu0 %414
        %v416 = vsel %vm393, %v411, 0.0
        %417 = vadd.xlane.f32.xlu0 %v416
        %v418 = vpop.xlane.xlu0 %417
        %v419 = vsel %vm393, %v412, 0.0
        %420 = vadd.xlane.f32.xlu0 %v419
        %v421 = vpop.xlane.xlu0 %420
        %v422 = vmul.f32 %v415, %v403
        %v423 = vmul.f32 %v418, %v403
        %v424 = vmul.f32 %v421, %v403
        %v425 = vadd.f32 %v422, 1e-05
        %v426 = vadd.f32 %v423, 1e-05
        %v427 = vadd.f32 %v424, 1e-05
        %v428 = vrsqrt.pop %v425
        %v429 = vrsqrt.pop %v426
        %v430 = vrsqrt.pop %v427
        %v431 = vmul.f32 %v407, %v428
        %v432 = vmul.f32 %v408, %v429
        %v433 = vmul.f32 %v409, %v430
        %v435 = vlaneseq
        %v436 = vshrl.u32 %v435, 7
        %v437 = vsub.s32 0, %v436
        %v438 = vrot.slane %v391, %v437
        %v440 = vmul.f32 %v431, %v438
        %v441 = vmul.f32 %v432, %v438
        %v442 = vmul.f32 %v433, %v438
        %v444 = vlaneseq
        %v445 = vshrl.u32 %v444, 7
        %v446 = vsub.s32 0, %v445
        %v447 = vrot.slane %v392, %v446
        %v449 = vadd.f32 %v440, %v447
        %v450 = vadd.f32 %v441, %v447
        %v451 = vadd.f32 %v442, %v447
        %452 = vst.msk [vmem:[%s244] sm:$0xff] %vm393, %v449
        %453 = vst.msk [vmem:[%s244 + $0x8] sm:$0xff] %vm393, %v450
        %454 = vst.msk [vmem:[%s244 + $0x10] sm:$0xff] %vm393, %v451
        %s455 = sand.u32 %s159, 1
        %s456 = scalar_lea.sflag [#allocation3], %s455
        %s457 = sand.u32 %s159, 1
        %s458 = smul.addr %s457, 24
        %s459 = scalar_lea.vmem [#allocation2], %s458
        // Predicated region
        $region45: #{tpu_custom_call.1} parent=43 // pred_check
          %p460 = pneg %p169
        $region46: #{tpu_custom_call.1} parent=43 // pred_check_branch
          %462 = sbr.rel (%p460) target = $region48
        $region47: #{tpu_custom_call.1} parent=43 // pred_region
          %s464 = ssub.s32 384, 384
          %465 = vsyncadd %s456, %s464
          %s466 = smul.addr %s20, 3
          %s467 = smul.addr %s466, 128
          %s468 = scalar_lea.hbm %s6, %s467
          %s469 = sshll.u32 %s459, 4
          %s470 = int_to_ptr.vmem [resolvable:$true] %s469
          %475 = dma.vmem_to_hbm [thread:$0]  %s470, 384, %s468, %s456, 128, 128, 8
        $region48: #{tpu_custom_call.1} parent=43 // pred_fallthru
          _
      $region44: #{tpu_custom_call.1} parent=5 // pred_fallthru
        _
      %p476 = scmp.le.s32.totalorder 2, %s15
      // Predicated region
      $region49: #{tpu_custom_call.1} parent=5 // pred_check
        %p477 = pneg %p476
      $region50: #{tpu_custom_call.1} parent=5 // pred_check_branch
        %479 = sbr.rel (%p477) target = $region52
      $region51: #{tpu_custom_call.1} parent=5 // pred_region
        %s480 = ssub.s32 %s15, 2
        // Predicated region
        $region53: #{tpu_custom_call.1} parent=51 // pred_check
          %p481 = pneg %p175
        $region54: #{tpu_custom_call.1} parent=51 // pred_check_branch
          %483 = sbr.rel (%p481) target = $region56
        $region55: #{tpu_custom_call.1} parent=51 // pred_region
          %s484 = sand.u32 %s160, 1
          %s485 = scalar_lea.sflag [#allocation3], %s484
          %s486 = sand.u32 %s160, 1
          %s487 = smul.addr %s486, 24
          %s488 = scalar_lea.vmem [#allocation2], %s487
          %489 = dma.done %s485, 384
        $region56: #{tpu_custom_call.1} parent=51 // pred_fallthru
          _
      $region52: #{tpu_custom_call.1} parent=5 // pred_fallthru
        _
    $region6: #{tpu_custom_call.1} parent=1 // loop_footer
      %s19 = sadd.s32 1, %s15
    $region7: #{tpu_custom_call.1} parent=1 // loop_footer_branch
      %14 = sbr.rel target = $region3
    $region8: #{tpu_custom_call.1} parent=1 // loop_exit
      _
    %490 = vsyncpa [#allocation3], 1
    %s491 = scalar_lea.sflag [#allocation3], 1
    %492 = vsyncpa %s491, 1

</llo_original>
